<compile_context>
chip_gen: v5e
topology: v5e:2x2
jax: 0.10.0
libtpu: 0.0.40
codegen_flags: <defaults>
</compile_context>

<pallas_src>
import functools

import jax
import jax.numpy as jnp
from jax.experimental import pallas as pl
from jax.experimental.pallas import tpu as pltpu


def _batch_conv1d_kernel(*refs, has_bias, taps, C, tj):
    # refs: x_ref, w_ref, [b_ref,] o_ref, x2_ref
    #   x_ref : (1, tj, Cx, Mx)   input slab (phase-deinterleaved if stride>1)
    #   w_ref : (1, OC, K*C)      fused weight, row index = k*C + c
    #   b_ref : (1, OC, 1)        only when has_bias
    #   o_ref : (1, tj, OC, H_out)
    #   x2_ref: (K*C, tj*H_out)   im2col scratch (VMEM)
    # taps: static tuple of (row_off, q, p0, p1) per kernel tap k, where
    #   source column = q + p for output position p, valid for p in [p0, p1).
    if has_bias:
        x_ref, w_ref, b_ref, o_ref, x2_ref = refs
    else:
        x_ref, w_ref, o_ref, x2_ref = refs
        b_ref = None

    H_out = o_ref.shape[-1]

    # Build the im2col slab with unit-stride lane slices only; out-of-range
    # halo segments (stride==1, padding>0) are zero-filled.
    for jj in range(tj):
        col0 = jj * H_out
        for k, (row_off, q, p0, p1) in enumerate(taps):
            rows = slice(k * C, (k + 1) * C)
            if p0 > 0:
                x2_ref[rows, col0:col0 + p0] = jnp.zeros((C, p0), x2_ref.dtype)
            if p1 < H_out:
                x2_ref[rows, col0 + p1:col0 + H_out] = jnp.zeros(
                    (C, H_out - p1), x2_ref.dtype)
            if p1 > p0:
                x2_ref[rows, col0 + p0:col0 + p1] = (
                    x_ref[0, jj, row_off:row_off + C, q + p0:q + p1])

    # Single fused MXU contraction of depth K*C over all tj signals at once.
    acc = jnp.dot(w_ref[0], x2_ref[...], preferred_element_type=jnp.float32)
    if has_bias:
        acc = acc + b_ref[0].astype(jnp.float32)        # (OC, 1) broadcast

    # Split the lane-folded result back into the PyTorch output layout.
    for jj in range(tj):
        o_ref[0, jj] = acc[:, jj * H_out:(jj + 1) * H_out].astype(o_ref.dtype)


def batch_conv1d(x, weight, bias=None, *, stride=1, padding=0, dilation=1):
    b_i, b_j, C, H = x.shape
    b_i2, OC, IC, K = weight.shape
    assert b_i == b_i2, "dim=0 of x must be equal in size to dim=0 of weight"
    assert C == IC, "in_channels mismatch"
    if bias is not None:
        assert bias.shape == (b_i, OC)

    Hp = H + 2 * padding
    H_out = (Hp - dilation * (K - 1) - 1) // stride + 1
    if H_out < 1:
        raise ValueError("kernel does not fit in the (padded) input")

    if stride == 1:
        # Padding handled in-kernel: no extra HBM pass over x at all.
        x_in = x
        Cx, Mx = C, H
        taps = []
        for k in range(K):
            q = k * dilation - padding
            p0 = max(0, -q)
            p1 = max(p0, min(H_out, H - q))
            taps.append((0, q, p0, p1))
    else:
        # De-interleave stride phases (padding folded into the same XLA pass):
        #   x_ph[i, j, r*C + c, m] = x_pad[i, j, c, m*stride + r].
        # TODO(synk): stride>1 still needs this one wrapper-side pass over x;
        # an in-kernel strided gather would avoid it but needs lane-strided
        # loads.
        x_p = x if padding == 0 else jnp.pad(
            x, ((0, 0), (0, 0), (0, 0), (padding, padding)))
        M = -(-Hp // stride)                   # ceil(Hp / stride)
        tail = M * stride - Hp
        if tail:
            x_p = jnp.pad(x_p, ((0, 0), (0, 0), (0, 0), (0, tail)))
        x_in = (x_p.reshape(b_i, b_j, C, M, stride)
                .transpose(0, 1, 4, 2, 3)
                .reshape(b_i, b_j, stride * C, M))
        Cx, Mx = stride * C, M
        taps = []
        for k in range(K):
            off = k * dilation
            taps.append(((off % stride) * C, off // stride, 0, H_out))

    # Fused weight: w2[i, oc, k*C + c] = weight[i, oc, c, k].
    w2 = weight.transpose(0, 1, 3, 2).reshape(b_i, OC, K * C)
    has_bias = bias is not None

    # Tile b_j: largest divisor of b_j whose per-step working set (double-
    # buffered input/output blocks + im2col scratch) stays well inside scoped
    # VMEM on every generation (v7x: 64 MiB physical / 32 MiB scoped); hard cap
    # keeps the fully-unrolled kernel body a reasonable size.
    itemsize = jnp.dtype(x.dtype).itemsize
    per_j = (2 * (Cx * Mx + OC * H_out) + K * C * H_out) * itemsize
    cap = max(1, min(int((6 * 1024 * 1024) // max(per_j, 1)), b_j, 32))
    tj = max(d for d in range(1, cap + 1) if b_j % d == 0)

    kernel = functools.partial(_batch_conv1d_kernel, has_bias=has_bias,
                               taps=tuple(taps), C=C, tj=tj)

    in_specs = [
        pl.BlockSpec((1, tj, Cx, Mx), lambda i, j: (i, j, 0, 0)),
        pl.BlockSpec((1, OC, K * C), lambda i, j: (i, 0, 0)),
    ]
    args = [x_in, w2]
    if has_bias:
        in_specs.append(pl.BlockSpec((1, OC, 1), lambda i, j: (i, 0, 0)))
        args.append(bias.astype(x.dtype).reshape(b_i, OC, 1))

    out = pl.pallas_call(
        kernel,
        out_shape=jax.ShapeDtypeStruct((b_i, b_j, OC, H_out), x.dtype),
        grid=(b_i, b_j // tj),
        in_specs=in_specs,
        out_specs=pl.BlockSpec((1, tj, OC, H_out), lambda i, j: (i, j, 0, 0)),
        scratch_shapes=[pltpu.VMEM((K * C, tj * H_out), x.dtype)],
        compiler_params=pltpu.CompilerParams(
            dimension_semantics=("parallel", "parallel"),
            vmem_limit_bytes=32 * 1024 * 1024),
    )(*args)
    return out


def _reference(x, weight, bias=None, *, stride=1, padding=0, dilation=1):
    b_i, b_j, C, H = x.shape
    _, OC, _, K = weight.shape
    xp = jnp.pad(x, ((0, 0), (0, 0), (0, 0), (padding, padding)))
    Hp = H + 2 * padding
    H_out = (Hp - dilation * (K - 1) - 1) // stride + 1
    out = jnp.zeros((b_i, b_j, OC, H_out), jnp.float32)
    for k in range(K):
        start = k * dilation
        stop = start + (H_out - 1) * stride + 1
        xk = xp[:, :, :, start:stop:stride]
        out = out + jnp.einsum("ioc,ijcp->ijop", weight[:, :, :, k], xk)
    if bias is not None:
        out = out + bias[:, None, :, None]
    return out.astype(x.dtype)


if __name__ == "__main__":
    key = jax.random.PRNGKey(0)
    k_x, k_w, k_b, k_x2, k_w2, k_x3, k_w3, k_b3 = jax.random.split(key, 8)

    OC, K = 8, 3

    # Config 1: defaults (stride=1, padding=0, dilation=1), with bias.
    b_i, b_j, C, H = 2, 3, 4, 16
    x = jax.random.normal(k_x, (b_i, b_j, C, H), dtype=jnp.float32)
    w = jax.random.normal(k_w, (b_i, OC, C, K), dtype=jnp.float32) * 0.1
    b = jax.random.normal(k_b, (b_i, OC), dtype=jnp.float32)
    out = jax.block_until_ready(batch_conv1d(x, w, b))
    ref = _reference(x, w, b)
    assert out.shape == (b_i, b_j, OC, H - K + 1), out.shape
    assert jnp.allclose(out, ref, atol=1e-4, rtol=1e-4), "mismatch (config 1)"

    # Config 2: stride=2, padding=1, dilation=3, no bias (exercises the
    # phase-deinterleave path, the no-bias kernel variant and tj divisors).
    b_i2, b_j2, C2, H2 = 2, 5, 4, 19
    x2 = jax.random.normal(k_x2, (b_i2, b_j2, C2, H2), dtype=jnp.float32)
    w2 = jax.random.normal(k_w2, (b_i2, OC, C2, K), dtype=jnp.float32) * 0.1
    out2 = jax.block_until_ready(
        batch_conv1d(x2, w2, None, stride=2, padding=1, dilation=3))
    ref2 = _reference(x2, w2, None, stride=2, padding=1, dilation=3)
    assert out2.shape == ref2.shape, (out2.shape, ref2.shape)
    assert jnp.allclose(out2, ref2, atol=1e-4, rtol=1e-4), "mismatch (config 2)"

    # Config 3: stride=1, padding=2, dilation=2, with bias (exercises the
    # in-kernel halo zero-fill path).
    b_i3, b_j3, C3, H3 = 2, 4, 4, 16
    x3 = jax.random.normal(k_x3, (b_i3, b_j3, C3, H3), dtype=jnp.float32)
    w3 = jax.random.normal(k_w3, (b_i3, OC, C3, K), dtype=jnp.float32) * 0.1
    b3 = jax.random.normal(k_b3, (b_i3, OC), dtype=jnp.float32)
    out3 = jax.block_until_ready(
        batch_conv1d(x3, w3, b3, stride=1, padding=2, dilation=2))
    ref3 = _reference(x3, w3, b3, stride=1, padding=2, dilation=2)
    assert out3.shape == ref3.shape, (out3.shape, ref3.shape)
    assert jnp.allclose(out3, ref3, atol=1e-4, rtol=1e-4), "mismatch (config 3)"

    print("KERNEL_OK")
</pallas_src>

<mosaic_0001>
module attributes {stable_mosaic.version = 11 : i64} {
  func.func @_batch_conv1d_kernel(%arg0: i32, %arg1: i32, %arg2: memref<1x3x4x16xf32, #tpu.memory_space<vmem>>, %arg3: memref<1x8x12xf32, #tpu.memory_space<vmem>>, %arg4: memref<1x8x1xf32, #tpu.memory_space<vmem>>, %arg5: memref<1x3x8x14xf32, #tpu.memory_space<vmem>>, %arg6: memref<12x42xf32, #tpu.memory_space<vmem>>) attributes {dimension_semantics = [#tpu.dimension_semantics<parallel>, #tpu.dimension_semantics<parallel>], iteration_bounds = array<i64: 2, 1>, scalar_prefetch = 0 : i64, scratch_operands = 1 : i64, tpu.core_type = #tpu.core_type<tc>, window_params = [{transform_indices = @transform_0, window_bounds = array<i64: 1, 3, 4, 16>}, {transform_indices = @transform_1, window_bounds = array<i64: 1, 8, 12>}, {transform_indices = @transform_2, window_bounds = array<i64: 1, 8, 1>}, {transform_indices = @transform_3, window_bounds = array<i64: 1, 3, 8, 14>}]} {
    %c0 = arith.constant 0 : index
    %c0_0 = arith.constant 0 : index
    %c0_1 = arith.constant 0 : index
    %c0_2 = arith.constant 0 : index
    %0 = vector.load %arg2[%c0, %c0_0, %c0_1, %c0_2] : memref<1x3x4x16xf32, #tpu.memory_space<vmem>>, vector<1x1x4x14xf32>
    %1 = vector.shape_cast %0 : vector<1x1x4x14xf32> to vector<4x14xf32>
    %c0_3 = arith.constant 0 : index
    %c0_4 = arith.constant 0 : index
    %2 = vector.load %arg6[%c0_3, %c0_4] : memref<12x42xf32, #tpu.memory_space<vmem>>, vector<4x14xf32>
    tpu.vector_store %arg6[%c0_3, %c0_4], %1 {strides = array<i32>} : memref<12x42xf32, #tpu.memory_space<vmem>>, vector<4x14xf32>,
    %c0_5 = arith.constant 0 : index
    %c0_6 = arith.constant 0 : index
    %c0_7 = arith.constant 0 : index
    %c1 = arith.constant 1 : index
    %3 = vector.load %arg2[%c0_5, %c0_6, %c0_7, %c1] : memref<1x3x4x16xf32, #tpu.memory_space<vmem>>, vector<1x1x4x14xf32>
    %4 = vector.shape_cast %3 : vector<1x1x4x14xf32> to vector<4x14xf32>
    %c4 = arith.constant 4 : index
    %c0_8 = arith.constant 0 : index
    %5 = vector.load %arg6[%c4, %c0_8] : memref<12x42xf32, #tpu.memory_space<vmem>>, vector<4x14xf32>
    tpu.vector_store %arg6[%c4, %c0_8], %4 {strides = array<i32>} : memref<12x42xf32, #tpu.memory_space<vmem>>, vector<4x14xf32>,
    %c0_9 = arith.constant 0 : index
    %c0_10 = arith.constant 0 : index
    %c0_11 = arith.constant 0 : index
    %c2 = arith.constant 2 : index
    %6 = vector.load %arg2[%c0_9, %c0_10, %c0_11, %c2] : memref<1x3x4x16xf32, #tpu.memory_space<vmem>>, vector<1x1x4x14xf32>
    %7 = vector.shape_cast %6 : vector<1x1x4x14xf32> to vector<4x14xf32>
    %c8 = arith.constant 8 : index
    %c0_12 = arith.constant 0 : index
    %8 = vector.load %arg6[%c8, %c0_12] : memref<12x42xf32, #tpu.memory_space<vmem>>, vector<4x14xf32>
    tpu.vector_store %arg6[%c8, %c0_12], %7 {strides = array<i32>} : memref<12x42xf32, #tpu.memory_space<vmem>>, vector<4x14xf32>,
    %c0_13 = arith.constant 0 : index
    %c1_14 = arith.constant 1 : index
    %c0_15 = arith.constant 0 : index
    %c0_16 = arith.constant 0 : index
    %9 = vector.load %arg2[%c0_13, %c1_14, %c0_15, %c0_16] : memref<1x3x4x16xf32, #tpu.memory_space<vmem>>, vector<1x1x4x14xf32>
    %10 = vector.shape_cast %9 : vector<1x1x4x14xf32> to vector<4x14xf32>
    %c0_17 = arith.constant 0 : index
    %c14 = arith.constant 14 : index
    %11 = vector.load %arg6[%c0_17, %c14] : memref<12x42xf32, #tpu.memory_space<vmem>>, vector<4x14xf32>
    tpu.vector_store %arg6[%c0_17, %c14], %10 {strides = array<i32>} : memref<12x42xf32, #tpu.memory_space<vmem>>, vector<4x14xf32>,
    %c0_18 = arith.constant 0 : index
    %c1_19 = arith.constant 1 : index
    %c0_20 = arith.constant 0 : index
    %c1_21 = arith.constant 1 : index
    %12 = vector.load %arg2[%c0_18, %c1_19, %c0_20, %c1_21] : memref<1x3x4x16xf32, #tpu.memory_space<vmem>>, vector<1x1x4x14xf32>
    %13 = vector.shape_cast %12 : vector<1x1x4x14xf32> to vector<4x14xf32>
    %c4_22 = arith.constant 4 : index
    %c14_23 = arith.constant 14 : index
    %14 = vector.load %arg6[%c4_22, %c14_23] : memref<12x42xf32, #tpu.memory_space<vmem>>, vector<4x14xf32>
    tpu.vector_store %arg6[%c4_22, %c14_23], %13 {strides = array<i32>} : memref<12x42xf32, #tpu.memory_space<vmem>>, vector<4x14xf32>,
    %c0_24 = arith.constant 0 : index
    %c1_25 = arith.constant 1 : index
    %c0_26 = arith.constant 0 : index
    %c2_27 = arith.constant 2 : index
    %15 = vector.load %arg2[%c0_24, %c1_25, %c0_26, %c2_27] : memref<1x3x4x16xf32, #tpu.memory_space<vmem>>, vector<1x1x4x14xf32>
    %16 = vector.shape_cast %15 : vector<1x1x4x14xf32> to vector<4x14xf32>
    %c8_28 = arith.constant 8 : index
    %c14_29 = arith.constant 14 : index
    %17 = vector.load %arg6[%c8_28, %c14_29] : memref<12x42xf32, #tpu.memory_space<vmem>>, vector<4x14xf32>
    tpu.vector_store %arg6[%c8_28, %c14_29], %16 {strides = array<i32>} : memref<12x42xf32, #tpu.memory_space<vmem>>, vector<4x14xf32>,
    %c0_30 = arith.constant 0 : index
    %c2_31 = arith.constant 2 : index
    %c0_32 = arith.constant 0 : index
    %c0_33 = arith.constant 0 : index
    %18 = vector.load %arg2[%c0_30, %c2_31, %c0_32, %c0_33] : memref<1x3x4x16xf32, #tpu.memory_space<vmem>>, vector<1x1x4x14xf32>
    %19 = vector.shape_cast %18 : vector<1x1x4x14xf32> to vector<4x14xf32>
    %c0_34 = arith.constant 0 : index
    %c28 = arith.constant 28 : index
    %20 = vector.load %arg6[%c0_34, %c28] : memref<12x42xf32, #tpu.memory_space<vmem>>, vector<4x14xf32>
    tpu.vector_store %arg6[%c0_34, %c28], %19 {strides = array<i32>} : memref<12x42xf32, #tpu.memory_space<vmem>>, vector<4x14xf32>,
    %c0_35 = arith.constant 0 : index
    %c2_36 = arith.constant 2 : index
    %c0_37 = arith.constant 0 : index
    %c1_38 = arith.constant 1 : index
    %21 = vector.load %arg2[%c0_35, %c2_36, %c0_37, %c1_38] : memref<1x3x4x16xf32, #tpu.memory_space<vmem>>, vector<1x1x4x14xf32>
    %22 = vector.shape_cast %21 : vector<1x1x4x14xf32> to vector<4x14xf32>
    %c4_39 = arith.constant 4 : index
    %c28_40 = arith.constant 28 : index
    %23 = vector.load %arg6[%c4_39, %c28_40] : memref<12x42xf32, #tpu.memory_space<vmem>>, vector<4x14xf32>
    tpu.vector_store %arg6[%c4_39, %c28_40], %22 {strides = array<i32>} : memref<12x42xf32, #tpu.memory_space<vmem>>, vector<4x14xf32>,
    %c0_41 = arith.constant 0 : index
    %c2_42 = arith.constant 2 : index
    %c0_43 = arith.constant 0 : index
    %c2_44 = arith.constant 2 : index
    %24 = vector.load %arg2[%c0_41, %c2_42, %c0_43, %c2_44] : memref<1x3x4x16xf32, #tpu.memory_space<vmem>>, vector<1x1x4x14xf32>
    %25 = vector.shape_cast %24 : vector<1x1x4x14xf32> to vector<4x14xf32>
    %c8_45 = arith.constant 8 : index
    %c28_46 = arith.constant 28 : index
    %26 = vector.load %arg6[%c8_45, %c28_46] : memref<12x42xf32, #tpu.memory_space<vmem>>, vector<4x14xf32>
    tpu.vector_store %arg6[%c8_45, %c28_46], %25 {strides = array<i32>} : memref<12x42xf32, #tpu.memory_space<vmem>>, vector<4x14xf32>,
    %c0_47 = arith.constant 0 : index
    %c0_48 = arith.constant 0 : index
    %c0_49 = arith.constant 0 : index
    %27 = vector.load %arg3[%c0_47, %c0_48, %c0_49] : memref<1x8x12xf32, #tpu.memory_space<vmem>>, vector<1x8x12xf32>
    %28 = vector.shape_cast %27 : vector<1x8x12xf32> to vector<8x12xf32>
    %c0_50 = arith.constant 0 : index
    %c0_51 = arith.constant 0 : index
    %29 = vector.load %arg6[%c0_50, %c0_51] : memref<12x42xf32, #tpu.memory_space<vmem>>, vector<12x42xf32>
    %cst = arith.constant dense<0.000000e+00> : vector<8x42xf32>
    %30 = tpu.matmul %28, %29, %cst {dimension_numbers = #tpu.dot_dimension_numbers<[1], [0], [0], [1], [0, 0, 1, 1], [], []>} : vector<8x12xf32>, vector<12x42xf32>, vector<8x42xf32> -> vector<8x42xf32>
    %c0_52 = arith.constant 0 : index
    %c0_53 = arith.constant 0 : index
    %c0_54 = arith.constant 0 : index
    %31 = vector.load %arg4[%c0_52, %c0_53, %c0_54] : memref<1x8x1xf32, #tpu.memory_space<vmem>>, vector<1x8x1xf32>
    %32 = vector.shape_cast %31 : vector<1x8x1xf32> to vector<8x1xf32>
    %33 = vector.broadcast %32 : vector<8x1xf32> to vector<8x42xf32>
    %34 = arith.addf %30, %33 : vector<8x42xf32>
    %35 = vector.extract_strided_slice %34 {offsets = [0, 0], sizes = [8, 14], strides = [1, 1]} : vector<8x42xf32> to vector<8x14xf32>
    %c0_55 = arith.constant 0 : index
    %c0_56 = arith.constant 0 : index
    %c0_57 = arith.constant 0 : index
    %c0_58 = arith.constant 0 : index
    %36 = vector.load %arg5[%c0_55, %c0_56, %c0_57, %c0_58] : memref<1x3x8x14xf32, #tpu.memory_space<vmem>>, vector<1x1x8x14xf32>
    %37 = vector.shape_cast %36 : vector<1x1x8x14xf32> to vector<8x14xf32>
    %38 = vector.shape_cast %35 : vector<8x14xf32> to vector<1x1x8x14xf32>
    tpu.vector_store %arg5[%c0_55, %c0_56, %c0_57, %c0_58], %38 {strides = array<i32>} : memref<1x3x8x14xf32, #tpu.memory_space<vmem>>, vector<1x1x8x14xf32>,
    %39 = vector.extract_strided_slice %34 {offsets = [0, 14], sizes = [8, 14], strides = [1, 1]} : vector<8x42xf32> to vector<8x14xf32>
    %c0_59 = arith.constant 0 : index
    %c1_60 = arith.constant 1 : index
    %c0_61 = arith.constant 0 : index
    %c0_62 = arith.constant 0 : index
    %40 = vector.load %arg5[%c0_59, %c1_60, %c0_61, %c0_62] : memref<1x3x8x14xf32, #tpu.memory_space<vmem>>, vector<1x1x8x14xf32>
    %41 = vector.shape_cast %40 : vector<1x1x8x14xf32> to vector<8x14xf32>
    %42 = vector.shape_cast %39 : vector<8x14xf32> to vector<1x1x8x14xf32>
    tpu.vector_store %arg5[%c0_59, %c1_60, %c0_61, %c0_62], %42 {strides = array<i32>} : memref<1x3x8x14xf32, #tpu.memory_space<vmem>>, vector<1x1x8x14xf32>,
    %43 = vector.extract_strided_slice %34 {offsets = [0, 28], sizes = [8, 14], strides = [1, 1]} : vector<8x42xf32> to vector<8x14xf32>
    %c0_63 = arith.constant 0 : index
    %c2_64 = arith.constant 2 : index
    %c0_65 = arith.constant 0 : index
    %c0_66 = arith.constant 0 : index
    %44 = vector.load %arg5[%c0_63, %c2_64, %c0_65, %c0_66] : memref<1x3x8x14xf32, #tpu.memory_space<vmem>>, vector<1x1x8x14xf32>
    %45 = vector.shape_cast %44 : vector<1x1x8x14xf32> to vector<8x14xf32>
    %46 = vector.shape_cast %43 : vector<8x14xf32> to vector<1x1x8x14xf32>
    tpu.vector_store %arg5[%c0_63, %c2_64, %c0_65, %c0_66], %46 {strides = array<i32>} : memref<1x3x8x14xf32, #tpu.memory_space<vmem>>, vector<1x1x8x14xf32>,
    return
  }
  func.func @transform_0(%arg0: i32, %arg1: i32) -> (i32, i32, i32, i32) {
    %c0_i32 = arith.constant 0 : i32
    %c0_i32_0 = arith.constant 0 : i32
    %c0_i32_1 = arith.constant 0 : i32
    return %arg0, %arg1, %c0_i32, %c0_i32_0 : i32, i32, i32, i32
  }
  func.func @transform_1(%arg0: i32, %arg1: i32) -> (i32, i32, i32) {
    %c0_i32 = arith.constant 0 : i32
    %c0_i32_0 = arith.constant 0 : i32
    %c0_i32_1 = arith.constant 0 : i32
    return %arg0, %c0_i32, %c0_i32_0 : i32, i32, i32
  }
  func.func @transform_2(%arg0: i32, %arg1: i32) -> (i32, i32, i32) {
    %c0_i32 = arith.constant 0 : i32
    %c0_i32_0 = arith.constant 0 : i32
    %c0_i32_1 = arith.constant 0 : i32
    return %arg0, %c0_i32, %c0_i32_0 : i32, i32, i32
  }
  func.func @transform_3(%arg0: i32, %arg1: i32) -> (i32, i32, i32, i32) {
    %c0_i32 = arith.constant 0 : i32
    %c0_i32_0 = arith.constant 0 : i32
    %c0_i32_1 = arith.constant 0 : i32
    return %arg0, %arg1, %c0_i32, %c0_i32_0 : i32, i32, i32, i32
  }
}

</mosaic_0001>

<llo_original>
// kernel: tpu_custom_call.1
$region0: #{tpu_custom_call.1}
  #allocation0 [shape = 'u32[]', space=smem, size = 0x4, offset = 0x4, fixed_abs, tag = 'smem constant byte address 0x4 - core index']
  #allocation1 [shape = 'u32[72,128]{1,0:T(1,128)}', space=vmem, size = 0x9000, scoped, tag = 'internal scratch']
  #allocation2 [shape = 'f32[12,42]{1,0:T(8,128)}', space=vmem, size = 0x2000, scoped, tag = 'scratch operand']
  %s0 = inlined_call_operand.hbm [shape: f32[2,3,4,16], index: 0, kind: input, shape index: {}]
  %s1 = inlined_call_operand.vmem [shape: f32[2,8,12], index: 1, kind: input, shape index: {}]
  %s2 = inlined_call_operand.vmem [shape: f32[2,8,1], index: 2, kind: input, shape index: {}]
  %s3 = inlined_call_operand.hbm [shape: f32[2,3,8,14], index: 3, kind: output, shape index: {}]
  %s4 = sld [smem:[#allocation0]]
  $region49: #{tpu_custom_call.1} parent=0
    _
  %s6 = ssub.s32 1, %s4
  %s7 = scalar_select 0, %s6, %s4
  $region1: #{tpu_custom_call.1} parent=0
    #allocation3 [shape = 'u8[12288]{0}', space=vmem, size = 0x3000, scoped, tag = 'input window, operand 0']
    #allocation4 [shape = 's32[2]{0}', space=sflag, size = 0x8, scoped, tag = 'scoped memory for tpu_custom_call.1']
    #allocation5 [shape = 's32[2]{0}', space=sflag, size = 0x8, scoped, tag = 'scoped memory for tpu_custom_call.1']
    #allocation6 [shape = 'u8[24576]{0}', space=vmem, size = 0x6000, scoped, tag = 'output window, operand 0']
    %8 = vsyncpa [#allocation4], 0
    %s9 = scalar_lea.sflag [#allocation4], 1
    %10 = vsyncpa %s9, 0
    %11 = vsyncpa [#allocation5], 0
    %s12 = scalar_lea.sflag [#allocation5], 1
    %13 = vsyncpa %s12, 0
    loop: start=0, step=1, limit=4
    $region2: #{tpu_custom_call.1} parent=1 // loop_pre_header
      _
    $region3: #{tpu_custom_call.1} parent=1 // loop_header
      %s15 = sphi 0, %s19
      %p16 = scmp.ge.s32.totalorder %s15, 4
      %s22 = sphi 0, %s34
      %s23 = sphi 0, %s30
      %s24 = sphi 0, %s22
      %s25 = sphi 0, %s23
      %s26 = sphi 0, %s24
      %s27 = sphi 0, %s25
      %s39 = sphi 0, %s41
      %s42 = sphi 0, %s39
      %s43 = sphi 0, %s42
      %s59 = sphi 0, %s43
      %s65 = sphi 0, %s67
      %s68 = sphi 0, %s65
      %s69 = sphi 0, %s68
      %s85 = sphi 0, %s69
      %s91 = sphi 0, %s93
      %s94 = sphi 0, %s91
      %s95 = sphi 0, %s94
      %s111 = sphi 0, %s95
      %s119 = sphi 0, %s121
      %s122 = sphi 0, %s119
      %s123 = sphi 0, %s122
      %s139 = sphi 0, %s123
    $region4: #{tpu_custom_call.1} parent=1 // loop_header_branch
      %18 = sbr.rel (%p16) target = $region8
    $region5: #{tpu_custom_call.1} parent=1 // loop_body
      %s20 = ssub.s32 %s15, 1
      %s21 = ssub.s32 %s15, 2
      %s28 = sadd.s32 1, %s23
      %p29 = scmp.ge.s32.totalorder %s28, 1
      %s30 = scalar_select %p29, 0, %s28
      %s31 = sadd.s32 1, %s22
      %s32 = scalar_select %p29, %s31, %s22
      %p33 = scmp.ge.s32.totalorder %s32, 2
      %s34 = scalar_select %p33, 0, %s32
      %s35 = ssub.s32 %s22, %s34
      %s36 = ssub.s32 %s23, %s30
      %s37 = sor.u32 %s35, %s36
      %p38 = scmp.eq.s32.totalorder %s37, 0
      %s40 = sadd.s32 %s39, 1
      %s41 = scalar_select %p38, %s39, %s40
      %p44 = pneg %p38
      %p45 = scmp.eq.s32.totalorder %s15, 1
      %p46 = por %p44, %p45
      %p47 = scmp.ne.s32.totalorder %s39, %s42
      %p48 = scmp.eq.s32.totalorder %s15, 0
      %p49 = por %p47, %p48
      %p50 = scmp.ne.s32.totalorder %s39, %s42
      %p51 = scmp.eq.s32.totalorder %s20, 1
      %p52 = por %p50, %p51
      %p53 = scmp.ne.s32.totalorder %s42, %s43
      %p54 = scmp.eq.s32.totalorder %s20, 0
      %p55 = por %p53, %p54
      %p56 = scmp.ne.s32.totalorder %s42, %s43
      %p57 = scmp.eq.s32.totalorder %s21, 1
      %p58 = por %p56, %p57
      %p60 = scmp.ne.s32.totalorder %s43, %s59
      %p61 = scmp.eq.s32.totalorder %s21, 0
      %p62 = por %p60, %p61
      %s63 = ssub.s32 %s22, %s34
      %p64 = scmp.eq.s32.totalorder %s63, 0
      %s66 = sadd.s32 %s65, 1
      %s67 = scalar_select %p64, %s65, %s66
      %p70 = pneg %p64
      %p71 = scmp.eq.s32.totalorder %s15, 1
      %p72 = por %p70, %p71
      %p73 = scmp.ne.s32.totalorder %s65, %s68
      %p74 = scmp.eq.s32.totalorder %s15, 0
      %p75 = por %p73, %p74
      %p76 = scmp.ne.s32.totalorder %s65, %s68
      %p77 = scmp.eq.s32.totalorder %s20, 1
      %p78 = por %p76, %p77
      %p79 = scmp.ne.s32.totalorder %s68, %s69
      %p80 = scmp.eq.s32.totalorder %s20, 0
      %p81 = por %p79, %p80
      %p82 = scmp.ne.s32.totalorder %s68, %s69
      %p83 = scmp.eq.s32.totalorder %s21, 1
      %p84 = por %p82, %p83
      %p86 = scmp.ne.s32.totalorder %s69, %s85
      %p87 = scmp.eq.s32.totalorder %s21, 0
      %p88 = por %p86, %p87
      %s89 = ssub.s32 %s22, %s34
      %p90 = scmp.eq.s32.totalorder %s89, 0
      %s92 = sadd.s32 %s91, 1
      %s93 = scalar_select %p90, %s91, %s92
      %p96 = pneg %p90
      %p97 = scmp.eq.s32.totalorder %s15, 1
      %p98 = por %p96, %p97
      %p99 = scmp.ne.s32.totalorder %s91, %s94
      %p100 = scmp.eq.s32.totalorder %s15, 0
      %p101 = por %p99, %p100
      %p102 = scmp.ne.s32.totalorder %s91, %s94
      %p103 = scmp.eq.s32.totalorder %s20, 1
      %p104 = por %p102, %p103
      %p105 = scmp.ne.s32.totalorder %s94, %s95
      %p106 = scmp.eq.s32.totalorder %s20, 0
      %p107 = por %p105, %p106
      %p108 = scmp.ne.s32.totalorder %s94, %s95
      %p109 = scmp.eq.s32.totalorder %s21, 1
      %p110 = por %p108, %p109
      %p112 = scmp.ne.s32.totalorder %s95, %s111
      %p113 = scmp.eq.s32.totalorder %s21, 0
      %p114 = por %p112, %p113
      %s115 = ssub.s32 %s22, %s34
      %s116 = ssub.s32 %s23, %s30
      %s117 = sor.u32 %s115, %s116
      %p118 = scmp.eq.s32.totalorder %s117, 0
      %s120 = sadd.s32 %s119, 1
      %s121 = scalar_select %p118, %s119, %s120
      %p124 = pneg %p118
      %p125 = scmp.eq.s32.totalorder %s15, 1
      %p126 = por %p124, %p125
      %p127 = scmp.ne.s32.totalorder %s119, %s122
      %p128 = scmp.eq.s32.totalorder %s15, 0
      %p129 = por %p127, %p128
      %p130 = scmp.ne.s32.totalorder %s119, %s122
      %p131 = scmp.eq.s32.totalorder %s20, 1
      %p132 = por %p130, %p131
      %p133 = scmp.ne.s32.totalorder %s122, %s123
      %p134 = scmp.eq.s32.totalorder %s20, 0
      %p135 = por %p133, %p134
      %p136 = scmp.ne.s32.totalorder %s122, %s123
      %p137 = scmp.eq.s32.totalorder %s21, 1
      %p138 = por %p136, %p137
      %p140 = scmp.ne.s32.totalorder %s123, %s139
      %p141 = scmp.eq.s32.totalorder %s21, 0
      %p142 = por %p140, %p141
      %p143 = scmp.le.s32.totalorder 1, %s15
      %p144 = scmp.lt.s32.totalorder %s15, 3
      %p145 = pnand %p143, %p144
      %p146 = pneg %p145
      // Predicated region
      $region9: #{tpu_custom_call.1} parent=5 // pred_check
        _
      $region10: #{tpu_custom_call.1} parent=5 // pred_check_branch
        %148 = sbr.rel (%p145) target = $region12
      $region11: #{tpu_custom_call.1} parent=5 // pred_region
        %s149 = ssub.s32 %s15, 1
      $region12: #{tpu_custom_call.1} parent=5 // pred_fallthru
        _
      %p150 = scmp.lt.s32.totalorder %s15, 2
      // Predicated region
      $region13: #{tpu_custom_call.1} parent=5 // pred_check
        %p151 = pneg %p150
      $region14: #{tpu_custom_call.1} parent=5 // pred_check_branch
        %153 = sbr.rel (%p151) target = $region16
      $region15: #{tpu_custom_call.1} parent=5 // pred_region
        // Predicated region
        $region17: #{tpu_custom_call.1} parent=15 // pred_check
          %p154 = pneg %p49
        $region18: #{tpu_custom_call.1} parent=15 // pred_check_branch
          %156 = sbr.rel (%p154) target = $region20
        $region19: #{tpu_custom_call.1} parent=15 // pred_region
          %s157 = sand.u32 %s39, 1
          %s158 = scalar_lea.sflag [#allocation4], %s157
          %s159 = sand.u32 %s39, 1
          %s160 = smul.addr %s159, 12
          %s161 = scalar_lea.vmem [#allocation3], %s160
          %s162 = smul.u32 3, %s23
          %164 = vsyncadd %s158, 0
          %s165 = smul.addr %s22, 3
          %s166 = sadd.s32 %s162, %s165
          %s167 = smul.addr %s166, 4
          %s168 = scalar_lea.hbm %s0, %s167
          %s169 = sshll.u32 %s168, 4
          %s170 = int_to_ptr.hbm [resolvable:$true] %s169
          %s171 = sshll.u32 %s161, 4
          %s172 = int_to_ptr.vmem [resolvable:$true] %s171
          %177 = dma.hbm_to_vmem [thread:$0]  %s170, 192, %s172, %s158, 64, 64, 4
        $region20: #{tpu_custom_call.1} parent=15 // pred_fallthru
          _
        // Predicated region
        $region21: #{tpu_custom_call.1} parent=15 // pred_check
          %p178 = pneg %p75
        $region22: #{tpu_custom_call.1} parent=15 // pred_check_branch
          %180 = sbr.rel (%p178) target = $region24
        $region23: #{tpu_custom_call.1} parent=15 // pred_region
          %p181 = scmp.lt.s32.totalorder %s22, 1
          %s182 = scalar_select %p181, %s22, 1
          %s183 = smul.addr %s182, 8
          %s184 = scalar_lea.vmem %s1, %s183
        $region24: #{tpu_custom_call.1} parent=15 // pred_fallthru
          _
        // Predicated region
        $region25: #{tpu_custom_call.1} parent=15 // pred_check
          %p185 = pneg %p101
        $region26: #{tpu_custom_call.1} parent=15 // pred_check_branch
          %187 = sbr.rel (%p185) target = $region28
        $region27: #{tpu_custom_call.1} parent=15 // pred_region
          %p188 = scmp.lt.s32.totalorder %s22, 1
          %s189 = scalar_select %p188, %s22, 1
          %s190 = smul.addr %s189, 8
          %s191 = scalar_lea.vmem %s2, %s190
        $region28: #{tpu_custom_call.1} parent=15 // pred_fallthru
          _
      $region16: #{tpu_custom_call.1} parent=5 // pred_fallthru
        _
      %p192 = scmp.le.s32.totalorder 1, %s15
      %p193 = scmp.lt.s32.totalorder %s15, 3
      %p194 = pnand %p192, %p193
      %p195 = pneg %p194
      // Predicated region
      $region29: #{tpu_custom_call.1} parent=5 // pred_check
        _
      $region30: #{tpu_custom_call.1} parent=5 // pred_check_branch
        %197 = sbr.rel (%p194) target = $region32
      $region31: #{tpu_custom_call.1} parent=5 // pred_region
        %s198 = ssub.s32 %s15, 1
        %s199 = sand.u32 %s42, 1
        %s200 = scalar_lea.sflag [#allocation4], %s199
        %s201 = sand.u32 %s42, 1
        %s202 = smul.addr %s201, 12
        %s203 = scalar_lea.vmem [#allocation3], %s202
        // Predicated region
        $region33: #{tpu_custom_call.1} parent=31 // pred_check
          %p204 = pneg %p55
        $region34: #{tpu_custom_call.1} parent=31 // pred_check_branch
          %206 = sbr.rel (%p204) target = $region36
        $region35: #{tpu_custom_call.1} parent=31 // pred_region
          %208 = dma.done %s200, 192
        $region36: #{tpu_custom_call.1} parent=31 // pred_fallthru
          _
        %s209 = sand.u32 %s42, 1
        %s210 = scalar_lea.sflag [#allocation4], %s209
        %s211 = sand.u32 %s42, 1
        %s212 = smul.addr %s211, 12
        %s213 = scalar_lea.vmem [#allocation3], %s212
        %p214 = pneg %p55
        %p215 = pneg %p52
        %p216 = scmp.lt.s32.totalorder %s24, 1
        %s217 = scalar_select %p216, %s24, 1
        %s218 = smul.addr %s217, 8
        %s219 = scalar_lea.vmem %s1, %s218
        %p220 = pneg %p81
        %p221 = pneg %p78
        %p222 = scmp.lt.s32.totalorder %s24, 1
        %s223 = scalar_select %p222, %s24, 1
        %s224 = smul.addr %s223, 8
        %s225 = scalar_lea.vmem %s2, %s224
        %p226 = pneg %p107
        %p227 = pneg %p104
        %p228 = pneg %p135
        %p229 = pneg %p132
        %s230 = sand.u32 %s122, 1
        %s231 = scalar_lea.sflag [#allocation5], %s230
        %s232 = sand.u32 %s122, 1
        %s233 = smul.addr %s232, 24
        %s234 = scalar_lea.vmem [#allocation6], %s233
        %s235 = smul.u32 3, %s25
        %p236 = scmp.lt.s32.totalorder %s24, 1
        %s237 = scalar_select %p236, %s24, 1
        %s238 = smul.addr %s237, 8
        %s239 = scalar_lea.vmem %s1, %s238
        %p240 = scmp.lt.s32.totalorder %s24, 1
        %s241 = scalar_select %p240, %s24, 1
        %s242 = smul.addr %s241, 8
        %s243 = scalar_lea.vmem %s2, %s242
        %s244 = smul.u32 3, %s25
        %v245 = vld [vmem:[%s203] sm:$0xf]
        %vm246 = vcmask 109568
        %247 = vst.msk [vmem:[#allocation2] sm:$0xf] %vm246, %v245
        %v248 = vld [vmem:[%s203] sm:$0xf]
        %250 = vrot.lane.b32.xlu0 %v248, 127
        %v251 = vpop.permute.xlu0 %250
        %253 = vst.msk [vmem:[#allocation2 + $0x4] sm:$0xf] %vm246, %v251
        %v254 = vld [vmem:[%s203] sm:$0xf]
        %256 = vrot.lane.b32.xlu0 %v254, 126
        %v257 = vpop.permute.xlu0 %256
        %259 = vst.msk [vmem:[#allocation2 + $0x8] sm:$0xf] %vm246, %v257
        %s260 = scalar_lea.vmem %s203, 4 [#allocation3]
        %v261 = vld [vmem:[%s260] sm:$0xf]
        %263 = vrot.lane.b32.xlu0 %v261, 14
        %v264 = vpop.permute.xlu0 %263
        %vm266 = vcmask 224368
        %267 = vst.msk [vmem:[#allocation2] sm:$0xf] %vm266, %v264
        %v268 = vld [vmem:[%s260] sm:$0xf]
        %270 = vrot.lane.b32.xlu0 %v268, 13
        %v271 = vpop.permute.xlu0 %270
        %273 = vst.msk [vmem:[#allocation2 + $0x4] sm:$0xf] %vm266, %v271
        %v274 = vld [vmem:[%s260] sm:$0xf]
        %276 = vrot.lane.b32.xlu0 %v274, 12
        %v277 = vpop.permute.xlu0 %276
        %279 = vst.msk [vmem:[#allocation2 + $0x8] sm:$0xf] %vm266, %v277
        %s280 = scalar_lea.vmem %s203, 8 [#allocation3]
        %v281 = vld [vmem:[%s280] sm:$0xf]
        %283 = vrot.lane.b32.xlu0 %v281, 28
        %v284 = vpop.permute.xlu0 %283
        %vm286 = vcmask 339168
        %287 = vst.msk [vmem:[#allocation2] sm:$0xf] %vm286, %v284
        %v288 = vld [vmem:[%s280] sm:$0xf]
        %290 = vrot.lane.b32.xlu0 %v288, 27
        %v291 = vpop.permute.xlu0 %290
        %293 = vst.msk [vmem:[#allocation2 + $0x4] sm:$0xf] %vm286, %v291
        %v294 = vld [vmem:[%s280] sm:$0xf]
        %296 = vrot.lane.b32.xlu0 %v294, 26
        %v297 = vpop.permute.xlu0 %296
        %299 = vst.msk [vmem:[#allocation2 + $0x8] sm:$0xf] %vm286, %v297
        %v300 = vld [vmem:[%s239] sm:$0xff]
        %v301 = vld [vmem:[#allocation2] sm:$0xff]
        %v302 = vld [vmem:[#allocation2 + $0x8] sm:$0xf]
        %v303 = vld [vmem:[%s243] sm:$0xff]
        %305 = vset.pattern.permute.xlu0 0
        %306 = vperm.xlu0 %305, %v303
        %v307 = vpop.permute.xlu0 %306
        %vm309 = vcmask 97280
        %v311 = vsel %vm309, %v300, 0
        %vm313 = vcmask 1043456
        %v315 = vsel %vm313, %v302, 0
        %317 = vmatpush.msra.mxu0 0.0
        %318 = vmatpush.msra.mxu0 0.0
        %319 = vmatpush.msra.mxu0 0.0
        %320 = vmatpush.msra.mxu0 0.0
        %321 = vmatpush.msra.mxu0 0.0
        %322 = vmatpush.msra.mxu0 0.0
        %323 = vmatpush.msra.mxu0 0.0
        %324 = vmatpush.msra.mxu0 0.0
        %325 = vmatpush.msra.mxu0 0.0
        %326 = vmatpush.msra.mxu0 0.0
        %327 = vmatpush.msra.mxu0 0.0
        %328 = vmatpush.msra.mxu0 0.0
        %329 = vmatpush.msra.mxu0 0.0
        %330 = vmatpush.msra.mxu0 0.0
        %331 = vmatpush.msra.mxu0 %v315
        %332 = vmatpush.msra.mxu0 %v301
        %333 = vmatmul.f32.gmra.mxu0 %v311
        %v334 = vpop.f32.mrf.mxu0
        %v335 = vadd.f32 %v307, %v334
        %336 = vdwg.mxu0
        %vm337 = vcmask 113664
        %338 = vst.msk [vmem:[%s234] sm:$0xff] %vm337, %v335
        %340 = vrot.lane.b32.xlu0 %v335, 114
        %v341 = vpop.permute.xlu0 %340
        %s343 = scalar_lea.vmem %s234, 8 [#allocation6]
        %344 = vst.msk [vmem:[%s343] sm:$0xff] %vm337, %v341
        %345 = vrot.lane.b32.xlu0 %v335, 100
        %v346 = vpop.permute.xlu0 %345
        %s348 = scalar_lea.vmem %s234, 16 [#allocation6]
        %349 = vst.msk [vmem:[%s348] sm:$0xff] %vm337, %v346
        %s350 = sand.u32 %s122, 1
        %s351 = scalar_lea.sflag [#allocation5], %s350
        %s352 = sand.u32 %s122, 1
        %s353 = smul.addr %s352, 24
        %s354 = scalar_lea.vmem [#allocation6], %s353
        // Predicated region
        $region37: #{tpu_custom_call.1} parent=31 // pred_check
          %p355 = pneg %p132
        $region38: #{tpu_custom_call.1} parent=31 // pred_check_branch
          %357 = sbr.rel (%p355) target = $region40
        $region39: #{tpu_custom_call.1} parent=31 // pred_region
          %s358 = smul.u32 3, %s25
          %360 = vsyncadd %s351, 0
          %s361 = smul.addr %s24, 3
          %s362 = sadd.s32 %s358, %s361
          %s363 = smul.addr %s362, 8
          %s364 = scalar_lea.hbm %s3, %s363
          %s365 = sshll.u32 %s354, 4
          %s366 = int_to_ptr.vmem [resolvable:$true] %s365
          %s367 = sshll.u32 %s364, 4
          %s368 = int_to_ptr.hbm [resolvable:$true] %s367
          %373 = dma.vmem_to_hbm [thread:$0]  %s366, 384, %s368, %s351, 128, 128, 8
        $region40: #{tpu_custom_call.1} parent=31 // pred_fallthru
          _
      $region32: #{tpu_custom_call.1} parent=5 // pred_fallthru
        _
      %p374 = scmp.le.s32.totalorder 2, %s15
      // Predicated region
      $region41: #{tpu_custom_call.1} parent=5 // pred_check
        %p375 = pneg %p374
      $region42: #{tpu_custom_call.1} parent=5 // pred_check_branch
        %377 = sbr.rel (%p375) target = $region44
      $region43: #{tpu_custom_call.1} parent=5 // pred_region
        %s378 = ssub.s32 %s15, 2
        // Predicated region
        $region45: #{tpu_custom_call.1} parent=43 // pred_check
          %p379 = pneg %p138
        $region46: #{tpu_custom_call.1} parent=43 // pred_check_branch
          %381 = sbr.rel (%p379) target = $region48
        $region47: #{tpu_custom_call.1} parent=43 // pred_region
          %s382 = sand.u32 %s123, 1
          %s383 = scalar_lea.sflag [#allocation5], %s382
          %s384 = sand.u32 %s123, 1
          %s385 = smul.addr %s384, 24
          %s386 = scalar_lea.vmem [#allocation6], %s385
          %388 = dma.done %s383, 384
        $region48: #{tpu_custom_call.1} parent=43 // pred_fallthru
          _
      $region44: #{tpu_custom_call.1} parent=5 // pred_fallthru
        _
    $region6: #{tpu_custom_call.1} parent=1 // loop_footer
      %s19 = sadd.s32 1, %s15
    $region7: #{tpu_custom_call.1} parent=1 // loop_footer_branch
      %14 = sbr.rel target = $region3
    $region8: #{tpu_custom_call.1} parent=1 // loop_exit
      _
    %389 = vsyncpa [#allocation4], 1
    %s390 = scalar_lea.sflag [#allocation4], 1
    %391 = vsyncpa %s390, 1
    %392 = vsyncpa [#allocation5], 1
    %s393 = scalar_lea.sflag [#allocation5], 1
    %394 = vsyncpa %s393, 1

</llo_original>
